<compile_context>
chip_gen: v7x
topology: tpu7x:2x2x1
jax: 0.10.0
libtpu: 0.0.40
codegen_flags: <defaults>
</compile_context>

<pallas_src>
import jax
import jax.numpy as jnp
from jax.experimental import pallas as pl
from jax.experimental.pallas import tpu as pltpu

LANE = 128                    # vreg lane width
SUB = 8                       # f32 sublane count
TARGET_TILE_BYTES = 2 << 20   # ~2 MiB per VMEM buffer (double-buffered in+out ~ 8 MiB)
MIN_SPLIT_BYTES = 512 << 10   # only split into >=2 grid steps once each step still has this much


def mlp_kernel(w1_ref, b1_ref, w2_ref, b2_ref, x_ref, o_ref):
    """2->2->2 MLP on a row-major-interleaved activation tile.

    x_ref/o_ref: (tile_rows, 128) VMEM blocks of x.reshape(-1); lanes alternate
      feature0, feature1 of consecutive batch rows (64 rows per 128-lane vector).
    w1_ref/w2_ref: (4,) SMEM, PyTorch (out, in) weights flattened row-major.
    b1_ref/b2_ref: (2,) SMEM biases.
    All math is VPU elementwise (plus two XLU rolls); no MXU, no weight DMAs.
    """
    x = x_ref[...]                                       # (tile_rows, 128)

    # Even/odd lane swizzle (pltpu.roll follows np.roll semantics: positive shift
    # moves elements toward higher lane indices).
    nxt = pltpu.roll(x, shift=LANE - 1, axis=1)          # lane l <- lane l+1 (mod 128)
    prv = pltpu.roll(x, shift=1, axis=1)                 # lane l <- lane l-1 (mod 128)
    lane = jax.lax.broadcasted_iota(jnp.int32, x.shape, 1)
    even = (lane % 2) == 0
    partner = jnp.where(even, nxt, prv)                  # the other feature of the same row
    x0 = jnp.where(even, x, partner)                     # input feature 0 on every lane
    x1 = jnp.where(even, partner, x)                     # input feature 1 on every lane

    # Layer 1: h[j] = relu(W1[j,0]*x0 + W1[j,1]*x1 + b1[j])
    h0 = jnp.maximum(w1_ref[0] * x0 + w1_ref[1] * x1 + b1_ref[0], 0.0)
    h1 = jnp.maximum(w1_ref[2] * x0 + w1_ref[3] * x1 + b1_ref[1], 0.0)

    # Layer 2, written back in the same interleaved layout:
    # even lanes hold output feature 0, odd lanes output feature 1.
    o_even = w2_ref[0] * h0 + w2_ref[1] * h1 + b2_ref[0]
    o_odd = w2_ref[2] * h0 + w2_ref[3] * h1 + b2_ref[1]
    o_ref[...] = jnp.where(even, o_even, o_odd).astype(o_ref.dtype)


def _round_up(n, m):
    return ((n + m - 1) // m) * m


def _choose_tiling(rows_total, itemsize):
    """Pick (tile_rows, num_tiles) for streaming a (rows, 128) array."""
    bytes_per_row = LANE * itemsize
    max_tile_rows = max(SUB, (TARGET_TILE_BYTES // bytes_per_row) // SUB * SUB)
    num_tiles = pl.cdiv(rows_total, max_tile_rows)
    # v7x has 2 TensorCores: make sure large problems get >= 2 (even) grid steps.
    if num_tiles == 1 and rows_total * bytes_per_row >= 2 * MIN_SPLIT_BYTES:
        num_tiles = 2
    if num_tiles > 1 and num_tiles % 2:
        num_tiles += 1
    # Tiles divide the work nearly evenly -> padding bounded by ~8 rows per tile.
    tile_rows = _round_up(pl.cdiv(rows_total, num_tiles), SUB)
    num_tiles = pl.cdiv(rows_total, tile_rows)
    return tile_rows, num_tiles


def simple_network(x, w1, b1, w2, b2):
    """Pallas equivalent of SimpleNetwork.forward: lin2(relu(lin1(x))).

    x: (B, 2) activations; w1, w2: (2, 2) PyTorch (out, in) weights; b1, b2: (2,).
    """
    B = x.shape[0]
    dtype = x.dtype
    itemsize = jnp.dtype(dtype).itemsize
    n = B * 2                                            # flat length, f0/f1 interleaved
    rows_total = pl.cdiv(n, LANE)
    tile_rows, num_tiles = _choose_tiling(rows_total, itemsize)
    rows_padded = num_tiles * tile_rows
    n_padded = rows_padded * LANE

    # Row-major flatten is a free view; pad (if any) is small and bounded.
    x_flat = x.reshape(-1)
    if n_padded != n:
        x_flat = jnp.pad(x_flat, (0, n_padded - n))
    x_tiled = x_flat.reshape(rows_padded, LANE)

    # 12 parameter scalars live in SMEM: no padded weight tiles, no weight DMAs.
    w1f = w1.reshape(-1).astype(jnp.float32)
    b1f = b1.reshape(-1).astype(jnp.float32)
    w2f = w2.reshape(-1).astype(jnp.float32)
    b2f = b2.reshape(-1).astype(jnp.float32)

    smem = pl.BlockSpec(memory_space=pltpu.MemorySpace.SMEM)
    stream_block = pl.BlockSpec((tile_rows, LANE), lambda i: (i, 0))

    out_tiled = pl.pallas_call(
        mlp_kernel,
        out_shape=jax.ShapeDtypeStruct((rows_padded, LANE), dtype),
        grid=(num_tiles,),
        in_specs=[smem, smem, smem, smem, stream_block],
        out_specs=stream_block,
        compiler_params=pltpu.CompilerParams(
            dimension_semantics=("parallel",)),
        cost_estimate=pl.CostEstimate(
            flops=22 * n_padded,                          # ~VPU ops per streamed element
            transcendentals=0,
            bytes_accessed=2 * n_padded * itemsize + 48),
    )(w1f, b1f, w2f, b2f, x_tiled)

    # Free reshape + cheap slice back to the (B, 2) row-major view.
    return out_tiled.reshape(-1)[:n].reshape(B, 2)


def reference(x, w1, b1, w2, b2):
    h = jnp.maximum(x @ w1.T + b1, 0.0)
    return h @ w2.T + b2


if __name__ == "__main__":
    key = jax.random.PRNGKey(0)
    kx, k1, k2, k3, k4 = jax.random.split(key, 5)

    B = 8  # batch
    x = jax.random.normal(kx, (B, 2), dtype=jnp.float32)

    # Deterministic parameter init; PyTorch convention: weight is (out, in).
    w1 = jax.random.normal(k1, (2, 2), dtype=jnp.float32) * 0.5
    b1 = jax.random.normal(k2, (2,), dtype=jnp.float32) * 0.5
    w2 = jax.random.normal(k3, (2, 2), dtype=jnp.float32) * 0.5
    b2 = jax.random.normal(k4, (2,), dtype=jnp.float32) * 0.5

    out = simple_network(x, w1, b1, w2, b2)
    out = jax.block_until_ready(out)

    ref = reference(x, w1, b1, w2, b2)
    assert out.shape == (B, 2)
    assert jnp.allclose(out, ref, atol=1e-5, rtol=1e-5), "mismatch vs reference"

    print("KERNEL_OK")
</pallas_src>

<mosaic_0001>
module attributes {stable_mosaic.version = 11 : i64} {
  func.func @mlp_kernel(%arg0: i32, %arg1: memref<4xf32, #tpu.memory_space<smem>>, %arg2: memref<2xf32, #tpu.memory_space<smem>>, %arg3: memref<4xf32, #tpu.memory_space<smem>>, %arg4: memref<2xf32, #tpu.memory_space<smem>>, %arg5: memref<8x128xf32, #tpu.memory_space<vmem>>, %arg6: memref<8x128xf32, #tpu.memory_space<vmem>>) attributes {dimension_semantics = [#tpu.dimension_semantics<parallel>], iteration_bounds = array<i64: 1>, scalar_prefetch = 0 : i64, scratch_operands = 0 : i64, tpu.core_type = #tpu.core_type<tc>, window_params = [{transform_indices = @transform_0, window_bounds = array<i64: 4>}, {transform_indices = @transform_1, window_bounds = array<i64: 2>}, {transform_indices = @transform_2, window_bounds = array<i64: 4>}, {transform_indices = @transform_3, window_bounds = array<i64: 2>}, {transform_indices = @transform_4, window_bounds = array<i64: 8, 128>}, {transform_indices = @transform_5, window_bounds = array<i64: 8, 128>}]} {
    %c0 = arith.constant 0 : index
    %c0_0 = arith.constant 0 : index
    %0 = vector.load %arg5[%c0, %c0_0] : memref<8x128xf32, #tpu.memory_space<vmem>>, vector<8x128xf32>
    %c127_i32 = arith.constant 127 : i32
    %1 = tpu.dynamic_rotate %0 by %c127_i32 dim 1 : vector<8x128xf32>, i32 -> vector<8x128xf32>
    %c1_i32 = arith.constant 1 : i32
    %2 = tpu.dynamic_rotate %0 by %c1_i32 dim 1 : vector<8x128xf32>, i32 -> vector<8x128xf32>
    %3 = tpu.iota {dimensions = array<i32: 1>} : vector<8x128xi32>
    %c2_i32 = arith.constant 2 : i32
    %c0_i32 = arith.constant 0 : i32
    %4 = arith.cmpi eq, %c2_i32, %c0_i32 : i32
    %c1_i32_1 = arith.constant 1 : i32
    %5 = arith.select %4, %c1_i32_1, %c2_i32 : i32
    %6 = vector.broadcast %5 : i32 to vector<8x128xi32>
    %7 = arith.remsi %3, %6 : vector<8x128xi32>
    %c0_i32_2 = arith.constant 0 : i32
    %8 = vector.broadcast %c0_i32_2 : i32 to vector<8x128xi32>
    %9 = arith.cmpi ne, %7, %8 : vector<8x128xi32>
    %c0_i32_3 = arith.constant 0 : i32
    %10 = vector.broadcast %c0_i32_3 : i32 to vector<8x128xi32>
    %11 = arith.cmpi slt, %7, %10 : vector<8x128xi32>
    %c0_i32_4 = arith.constant 0 : i32
    %12 = arith.cmpi slt, %5, %c0_i32_4 : i32
    %13 = vector.broadcast %12 : i1 to vector<8x128xi1>
    %14 = vector.broadcast %13 : vector<8x128xi1> to vector<8x128xi1>
    %15 = arith.xori %11, %14 : vector<8x128xi1>
    %16 = arith.andi %15, %9 : vector<8x128xi1>
    %17 = vector.broadcast %5 : i32 to vector<8x128xi32>
    %18 = arith.addi %7, %17 : vector<8x128xi32>
    %19 = arith.select %16, %18, %7 : vector<8x128xi1>, vector<8x128xi32>
    %c0_i32_5 = arith.constant 0 : i32
    %20 = vector.broadcast %c0_i32_5 : i32 to vector<8x128xi32>
    %21 = arith.cmpi eq, %19, %20 : vector<8x128xi32>
    %22 = arith.select %21, %1, %2 : vector<8x128xi1>, vector<8x128xf32>
    %23 = arith.select %21, %0, %22 : vector<8x128xi1>, vector<8x128xf32>
    %24 = arith.select %21, %22, %0 : vector<8x128xi1>, vector<8x128xf32>
    %c0_6 = arith.constant 0 : index
    %25 = memref.load %arg1[%c0_6] : memref<4xf32, #tpu.memory_space<smem>>
    %26 = vector.broadcast %25 : f32 to vector<8x128xf32>
    %27 = arith.mulf %26, %23 : vector<8x128xf32>
    %c1 = arith.constant 1 : index
    %28 = memref.load %arg1[%c1] : memref<4xf32, #tpu.memory_space<smem>>
    %29 = vector.broadcast %28 : f32 to vector<8x128xf32>
    %30 = arith.mulf %29, %24 : vector<8x128xf32>
    %31 = arith.addf %27, %30 : vector<8x128xf32>
    %c0_7 = arith.constant 0 : index
    %32 = memref.load %arg2[%c0_7] : memref<2xf32, #tpu.memory_space<smem>>
    %33 = vector.broadcast %32 : f32 to vector<8x128xf32>
    %34 = arith.addf %31, %33 : vector<8x128xf32>
    %cst = arith.constant 0.000000e+00 : f32
    %35 = vector.broadcast %cst : f32 to vector<8x128xf32>
    %36 = arith.maximumf %34, %35 : vector<8x128xf32>
    %c2 = arith.constant 2 : index
    %37 = memref.load %arg1[%c2] : memref<4xf32, #tpu.memory_space<smem>>
    %38 = vector.broadcast %37 : f32 to vector<8x128xf32>
    %39 = arith.mulf %38, %23 : vector<8x128xf32>
    %c3 = arith.constant 3 : index
    %40 = memref.load %arg1[%c3] : memref<4xf32, #tpu.memory_space<smem>>
    %41 = vector.broadcast %40 : f32 to vector<8x128xf32>
    %42 = arith.mulf %41, %24 : vector<8x128xf32>
    %43 = arith.addf %39, %42 : vector<8x128xf32>
    %c1_8 = arith.constant 1 : index
    %44 = memref.load %arg2[%c1_8] : memref<2xf32, #tpu.memory_space<smem>>
    %45 = vector.broadcast %44 : f32 to vector<8x128xf32>
    %46 = arith.addf %43, %45 : vector<8x128xf32>
    %cst_9 = arith.constant 0.000000e+00 : f32
    %47 = vector.broadcast %cst_9 : f32 to vector<8x128xf32>
    %48 = arith.maximumf %46, %47 : vector<8x128xf32>
    %c0_10 = arith.constant 0 : index
    %49 = memref.load %arg3[%c0_10] : memref<4xf32, #tpu.memory_space<smem>>
    %50 = vector.broadcast %49 : f32 to vector<8x128xf32>
    %51 = arith.mulf %50, %36 : vector<8x128xf32>
    %c1_11 = arith.constant 1 : index
    %52 = memref.load %arg3[%c1_11] : memref<4xf32, #tpu.memory_space<smem>>
    %53 = vector.broadcast %52 : f32 to vector<8x128xf32>
    %54 = arith.mulf %53, %48 : vector<8x128xf32>
    %55 = arith.addf %51, %54 : vector<8x128xf32>
    %c0_12 = arith.constant 0 : index
    %56 = memref.load %arg4[%c0_12] : memref<2xf32, #tpu.memory_space<smem>>
    %57 = vector.broadcast %56 : f32 to vector<8x128xf32>
    %58 = arith.addf %55, %57 : vector<8x128xf32>
    %c2_13 = arith.constant 2 : index
    %59 = memref.load %arg3[%c2_13] : memref<4xf32, #tpu.memory_space<smem>>
    %60 = vector.broadcast %59 : f32 to vector<8x128xf32>
    %61 = arith.mulf %60, %36 : vector<8x128xf32>
    %c3_14 = arith.constant 3 : index
    %62 = memref.load %arg3[%c3_14] : memref<4xf32, #tpu.memory_space<smem>>
    %63 = vector.broadcast %62 : f32 to vector<8x128xf32>
    %64 = arith.mulf %63, %48 : vector<8x128xf32>
    %65 = arith.addf %61, %64 : vector<8x128xf32>
    %c1_15 = arith.constant 1 : index
    %66 = memref.load %arg4[%c1_15] : memref<2xf32, #tpu.memory_space<smem>>
    %67 = vector.broadcast %66 : f32 to vector<8x128xf32>
    %68 = arith.addf %65, %67 : vector<8x128xf32>
    %69 = arith.select %21, %58, %68 : vector<8x128xi1>, vector<8x128xf32>
    %c0_16 = arith.constant 0 : index
    %c0_17 = arith.constant 0 : index
    %70 = vector.load %arg6[%c0_16, %c0_17] : memref<8x128xf32, #tpu.memory_space<vmem>>, vector<8x128xf32>
    tpu.vector_store %arg6[%c0_16, %c0_17], %69 {strides = array<i32>} : memref<8x128xf32, #tpu.memory_space<vmem>>, vector<8x128xf32>,
    return
  }
  func.func @transform_0(%arg0: i32) -> i32 {
    %c0_i32 = arith.constant 0 : i32
    %c0_i32_0 = arith.constant 0 : i32
    return %c0_i32 : i32
  }
  func.func @transform_1(%arg0: i32) -> i32 {
    %c0_i32 = arith.constant 0 : i32
    %c0_i32_0 = arith.constant 0 : i32
    return %c0_i32 : i32
  }
  func.func @transform_2(%arg0: i32) -> i32 {
    %c0_i32 = arith.constant 0 : i32
    %c0_i32_0 = arith.constant 0 : i32
    return %c0_i32 : i32
  }
  func.func @transform_3(%arg0: i32) -> i32 {
    %c0_i32 = arith.constant 0 : i32
    %c0_i32_0 = arith.constant 0 : i32
    return %c0_i32 : i32
  }
  func.func @transform_4(%arg0: i32) -> (i32, i32) {
    %c0_i32 = arith.constant 0 : i32
    %c0_i32_0 = arith.constant 0 : i32
    return %arg0, %c0_i32 : i32, i32
  }
  func.func @transform_5(%arg0: i32) -> (i32, i32) {
    %c0_i32 = arith.constant 0 : i32
    %c0_i32_0 = arith.constant 0 : i32
    return %arg0, %c0_i32 : i32, i32
  }
}

</mosaic_0001>

<llo_original>
// kernel: tpu_custom_call.1
$region0: #{tpu_custom_call.1}
  #allocation0 [shape = 'u32[]', space=smem, size = 0x4, offset = 0x4, fixed_abs, tag = 'smem constant byte address 0x4 - core index']
  #allocation1 [shape = 'u32[144,128]{1,0:T(1,128)}', space=vmem, size = 0x12000, scoped, tag = 'internal scratch']
  %s0 = inlined_call_operand.hbm [shape: f32[4], index: 0, kind: input, shape index: {}]
  %s1 = inlined_call_operand.vmem [shape: f32[2], index: 1, kind: input, shape index: {}]
  %s2 = inlined_call_operand.vmem [shape: f32[4], index: 2, kind: input, shape index: {}]
  %s3 = inlined_call_operand.vmem [shape: f32[2], index: 3, kind: input, shape index: {}]
  %s4 = inlined_call_operand.vmem [shape: f32[8,128], index: 4, kind: input, shape index: {}]
  %s5 = inlined_call_operand.hbm [shape: f32[8,128], index: 5, kind: output, shape index: {}]
  %s6 = sld [smem:[#allocation0]]
  $region46: #{tpu_custom_call.1} parent=0
    _
  %s8 = ssub.s32 1, %s6
  %s9 = scalar_select 0, %s8, %s6
  $region1: #{tpu_custom_call.1} parent=0
    #allocation2 [shape = 'u8[512]{0}', space=smem, size = 0x200, scoped, tag = 'input window, operand 0, single buffered']
    #allocation3 [shape = 's32[1]{0}', space=sflag, size = 0x4, scoped, tag = 'scoped memory for tpu_custom_call.1']
    #allocation4 [shape = 's32[1]{0}', space=sflag, size = 0x4, scoped, tag = 'scoped memory for tpu_custom_call.1']
    #allocation5 [shape = 's32[1]{0}', space=sflag, size = 0x4, scoped, tag = 'scoped memory for tpu_custom_call.1']
    #allocation6 [shape = 'u8[512]{0}', space=smem, size = 0x200, scoped, tag = 'input window, operand 1, single buffered']
    #allocation7 [shape = 'u8[512]{0}', space=smem, size = 0x200, scoped, tag = 'input window, operand 2, single buffered']
    #allocation8 [shape = 's32[1]{0}', space=sflag, size = 0x4, scoped, tag = 'scoped memory for tpu_custom_call.1']
    #allocation9 [shape = 'u8[512]{0}', space=smem, size = 0x200, scoped, tag = 'input window, operand 3, single buffered']
    #allocation10 [shape = 'u8[4096]{0}', space=vmem, size = 0x1000, scoped, tag = 'output window, operand 0, single buffered']
    %10 = vsyncpa [#allocation4], 0
    %11 = vsyncpa [#allocation5], 0
    %12 = vsyncpa [#allocation8], 0
    %13 = vsyncpa [#allocation3], 0
    // Predicated region
    $region2: #{tpu_custom_call.1} parent=1 // pred_check
      _
    $region3: #{tpu_custom_call.1} parent=1 // pred_check_branch
      %15 = sbr.rel (0) target = $region5
    $region4: #{tpu_custom_call.1} parent=1 // pred_region
      %s17 = ssub.s32 16, 16
      %18 = vsyncadd [#allocation4], %s17
      %21 = dma.hbm_to_smem %s0, 16, [#allocation2], [#allocation4]
    $region5: #{tpu_custom_call.1} parent=1 // pred_fallthru
      _
    // Predicated region
    $region6: #{tpu_custom_call.1} parent=1 // pred_check
      _
    $region7: #{tpu_custom_call.1} parent=1 // pred_check_branch
      %23 = sbr.rel (0) target = $region9
    $region8: #{tpu_custom_call.1} parent=1 // pred_region
      %s25 = ssub.s32 16, 16
      %26 = vsyncadd [#allocation5], %s25
      %s28 = sshll.u32 %s1, 4
      %s29 = int_to_ptr.vmem [resolvable:$true] %s28
      %31 = dma.vmem_to_smem %s29, 16, [#allocation6], [#allocation5]
    $region9: #{tpu_custom_call.1} parent=1 // pred_fallthru
      _
    // Predicated region
    $region10: #{tpu_custom_call.1} parent=1 // pred_check
      _
    $region11: #{tpu_custom_call.1} parent=1 // pred_check_branch
      %33 = sbr.rel (0) target = $region13
    $region12: #{tpu_custom_call.1} parent=1 // pred_region
      %s35 = ssub.s32 16, 16
      %36 = vsyncadd [#allocation8], %s35
      %s38 = sshll.u32 %s2, 4
      %s39 = int_to_ptr.vmem [resolvable:$true] %s38
      %41 = dma.vmem_to_smem %s39, 16, [#allocation7], [#allocation8]
    $region13: #{tpu_custom_call.1} parent=1 // pred_fallthru
      _
    // Predicated region
    $region14: #{tpu_custom_call.1} parent=1 // pred_check
      _
    $region15: #{tpu_custom_call.1} parent=1 // pred_check_branch
      %43 = sbr.rel (0) target = $region17
    $region16: #{tpu_custom_call.1} parent=1 // pred_region
      %s45 = ssub.s32 16, 16
      %46 = vsyncadd [#allocation8], %s45
      %s48 = sshll.u32 %s3, 4
      %s49 = int_to_ptr.vmem [resolvable:$true] %s48
      %51 = dma.vmem_to_smem %s49, 16, [#allocation9], [#allocation8]
    $region17: #{tpu_custom_call.1} parent=1 // pred_fallthru
      _
    // Predicated region
    $region18: #{tpu_custom_call.1} parent=1 // pred_check
      _
    $region19: #{tpu_custom_call.1} parent=1 // pred_check_branch
      %53 = sbr.rel (0) target = $region21
    $region20: #{tpu_custom_call.1} parent=1 // pred_region
      _
    $region21: #{tpu_custom_call.1} parent=1 // pred_fallthru
      _
    // Predicated region
    $region22: #{tpu_custom_call.1} parent=1 // pred_check
      _
    $region23: #{tpu_custom_call.1} parent=1 // pred_check_branch
      %55 = sbr.rel (0) target = $region25
    $region24: #{tpu_custom_call.1} parent=1 // pred_region
      %56 = dma.done [#allocation4], 16
    $region25: #{tpu_custom_call.1} parent=1 // pred_fallthru
      _
    // Predicated region
    $region26: #{tpu_custom_call.1} parent=1 // pred_check
      _
    $region27: #{tpu_custom_call.1} parent=1 // pred_check_branch
      %58 = sbr.rel (0) target = $region29
    $region28: #{tpu_custom_call.1} parent=1 // pred_region
      %59 = dma.done [#allocation5], 16
    $region29: #{tpu_custom_call.1} parent=1 // pred_fallthru
      _
    // Predicated region
    $region30: #{tpu_custom_call.1} parent=1 // pred_check
      _
    $region31: #{tpu_custom_call.1} parent=1 // pred_check_branch
      %61 = sbr.rel (0) target = $region33
    $region32: #{tpu_custom_call.1} parent=1 // pred_region
      %62 = dma.done [#allocation8], 16
    $region33: #{tpu_custom_call.1} parent=1 // pred_fallthru
      _
    // Predicated region
    $region34: #{tpu_custom_call.1} parent=1 // pred_check
      _
    $region35: #{tpu_custom_call.1} parent=1 // pred_check_branch
      %64 = sbr.rel (0) target = $region37
    $region36: #{tpu_custom_call.1} parent=1 // pred_region
      %65 = dma.done [#allocation8], 16
    $region37: #{tpu_custom_call.1} parent=1 // pred_fallthru
      _
    %66 = sfence
    %v67 = vld [vmem:[%s4] sm:$0xff]
    %68 = vrot.lane.b32.xlu0 %v67, 127
    %v69 = vpop.permute.xlu0 %68
    %70 = vrot.lane.b32.xlu0 %v67, 1
    %v71 = vpop.permute.xlu0 %70
    %v72 = vlaneseq
    %v73 = vand.u32 %v72, 127
    %vm74 = vcmp.lt.s32.totalorder %v73, 0
    %v75 = vsub.s32 0, %v73
    %v76 = vsel %vm74, %v75, %v73
    %v77 = vshrl.u32 %v76, 1
    %v78 = vand.u32 %v76, 1
    %v79 = vsub.s32 0, %v78
    %v80 = vsel %vm74, %v79, %v78
    %vm81 = vcmp.ne.s32.totalorder %v80, 0
    %vm82 = vcmp.lt.s32.totalorder %v80, 0
    %vm83 = vmand %vm82, %vm81
    %v84 = vadd.s32 %v80, 2
    %v85 = vsel %vm83, %v84, %v80
    %vm86 = vcmp.eq.s32.totalorder %v85, 0
    %v87 = vsel %vm86, %v67, %v71
    %v88 = vsel %vm86, %v69, %v67
    %s89 = sld [smem:[#allocation2]]
    %v90 = vstv %s89
    %v91 = vmul.f32 %v90, %v87
    %s92 = sld [smem:[#allocation2 + $0x1]]
    %v93 = vstv %s92
    %v94 = vmul.f32 %v93, %v88
    %v95 = vadd.f32 %v91, %v94
    %s96 = sld [smem:[#allocation6]]
    %v97 = vstv %s96
    %v98 = vadd.f32 %v95, %v97
    %v99 = vmax.f32 %v98, 0.0
    %s100 = sld [smem:[#allocation2 + $0x2]]
    %v101 = vstv %s100
    %v102 = vmul.f32 %v101, %v87
    %s103 = sld [smem:[#allocation2 + $0x3]]
    %v104 = vstv %s103
    %v105 = vmul.f32 %v104, %v88
    %v106 = vadd.f32 %v102, %v105
    %s107 = sld [smem:[#allocation6 + $0x1]]
    %v108 = vstv %s107
    %v109 = vadd.f32 %v106, %v108
    %v110 = vmax.f32 %v109, 0.0
    %s111 = sld [smem:[#allocation7]]
    %v112 = vstv %s111
    %v113 = vmul.f32 %v112, %v99
    %s114 = sld [smem:[#allocation7 + $0x1]]
    %v115 = vstv %s114
    %v116 = vmul.f32 %v115, %v110
    %v117 = vadd.f32 %v113, %v116
    %s118 = sld [smem:[#allocation9]]
    %v119 = vstv %s118
    %v120 = vadd.f32 %v117, %v119
    %s121 = sld [smem:[#allocation7 + $0x2]]
    %v122 = vstv %s121
    %v123 = vmul.f32 %v122, %v99
    %s124 = sld [smem:[#allocation7 + $0x3]]
    %v125 = vstv %s124
    %v126 = vmul.f32 %v125, %v110
    %v127 = vadd.f32 %v123, %v126
    %s128 = sld [smem:[#allocation9 + $0x1]]
    %v129 = vstv %s128
    %v130 = vadd.f32 %v127, %v129
    %v131 = vsel %vm86, %v120, %v130
    %132 = vst [vmem:[#allocation10] sm:$0xff] %v131
    // Predicated region
    $region38: #{tpu_custom_call.1} parent=1 // pred_check
      _
    $region39: #{tpu_custom_call.1} parent=1 // pred_check_branch
      %134 = sbr.rel (0) target = $region41
    $region40: #{tpu_custom_call.1} parent=1 // pred_region
      %s136 = ssub.s32 128, 128
      %137 = vsyncadd [#allocation3], %s136
      %s139 = sshll.u32 [#allocation10], 4
      %s140 = int_to_ptr.vmem [resolvable:$true] %s139
      %142 = dma.vmem_to_hbm [thread:$0]  %s140, 128, %s5, [#allocation3]
    $region41: #{tpu_custom_call.1} parent=1 // pred_fallthru
      _
    // Predicated region
    $region42: #{tpu_custom_call.1} parent=1 // pred_check
      _
    $region43: #{tpu_custom_call.1} parent=1 // pred_check_branch
      %144 = sbr.rel (0) target = $region45
    $region44: #{tpu_custom_call.1} parent=1 // pred_region
      %145 = dma.done [#allocation3], 128
    $region45: #{tpu_custom_call.1} parent=1 // pred_fallthru
      _
    %146 = vsyncpa [#allocation3], 1
    %147 = vsyncpa [#allocation4], 1
    %148 = vsyncpa [#allocation5], 1
    %149 = vsyncpa [#allocation8], 1

</llo_original>
